<compile_context>
chip_gen: v5e
topology: v5e:2x2
jax: 0.10.0
libtpu: 0.0.40
codegen_flags: <defaults>
</compile_context>

<pallas_src>
import functools

import jax
import jax.numpy as jnp
from jax.experimental import pallas as pl
from jax.experimental.pallas import tpu as pltpu

LANE = 128        # padded hidden width (linear1 output) -> full 128-wide MXU columns
H1 = 100          # true hidden width of linear1
H2 = 20           # true output width of linear2
MAX_TILE_B = 4096 # review-recommended upper bound on the batch tile


def mlp_kernel(x_ref, w1_ref, b1_ref, w2_ref, b2_ref, o_ref):
    # x_ref: (tile_b, D) f32 | w1_ref: (D, 128) bf16 | b1_ref: (1, 128) f32
    # w2_ref: (128, 20) bf16 | b2_ref: (1, 20) f32   | o_ref: (tile_b, 20) f32
    x = x_ref[...].astype(w1_ref.dtype)                         # bf16 for the MXU
    h = jnp.dot(x, w1_ref[...], preferred_element_type=jnp.float32)
    h = jnp.maximum(h + b1_ref[...], 0.0)                       # ReLU, f32
    y = jnp.dot(h.astype(w2_ref.dtype), w2_ref[...],
                preferred_element_type=jnp.float32)
    o_ref[...] = jnp.maximum(y + b2_ref[...], 0.0)              # ReLU, f32, real width


def _round_up(v, m):
    return ((v + m - 1) // m) * m


def _choose_tile_b(batch, d, max_tile_b=None):
    """Largest batch tile (multiple of 16) whose per-step footprint fits VMEM.

    Per-row bytes: double-buffered f32 x tile + double-buffered (lane-padded) f32
    output slab + in-kernel f32/bf16 intermediates (128-wide h/y)."""
    budget = 32 << 20
    per_row = 2 * d * 4 + 2 * LANE * 4 + 3 * LANE * 4 + 2 * d
    cap = max(16, min(MAX_TILE_B, (budget // per_row) // 16 * 16))
    if max_tile_b is not None:
        cap = max(16, min(cap, (max_tile_b // 16) * 16))
    bp = _round_up(batch, 16)
    if bp <= cap:
        return bp
    # Rebalance so every grid step gets a roughly equal tile (grid stays >= 2).
    n_steps = pl.cdiv(bp, cap)
    return _round_up(pl.cdiv(batch, n_steps), 16)


def prepare_params(w1, b1, w2, b2, compute_dtype=jnp.bfloat16):
    """One-time weight prep (hoisted out of the forward path).

    Zero-pads the hidden dim 100 -> 128 and casts weights to bf16. Padded hidden
    lanes get zero weight columns + zero bias, so after ReLU they are exactly 0,
    and rows 100..127 of w2p are zero, so the padding is inert.
    Weights are stored transposed vs. PyTorch: w1 (D,100), b1 (1,100), w2 (100,20), b2 (1,20).
    """
    d = w1.shape[0]
    w1p = jnp.zeros((d, LANE), compute_dtype).at[:, :H1].set(w1.astype(compute_dtype))
    b1p = jnp.zeros((1, LANE), jnp.float32).at[:, :H1].set(
        b1.reshape(1, -1).astype(jnp.float32))
    w2p = jnp.zeros((LANE, H2), compute_dtype).at[:H1, :].set(w2.astype(compute_dtype))
    b2p = b2.reshape(1, -1).astype(jnp.float32)
    return w1p, b1p, w2p, b2p


@functools.partial(jax.jit, static_argnames=("max_tile_b",))
def mlp_forward(x, w1p, b1p, w2p, b2p, *, max_tile_b=None):
    """x: (B, D). Returns (B, 20) float32. Pass params from prepare_params()."""
    B, D = x.shape
    x = x.astype(jnp.float32)          # mirrors torch `x.float()`; no-op if already f32
    tile_b = _choose_tile_b(B, D, max_tile_b)
    grid = (pl.cdiv(B, tile_b),)

    # VMEM budget: double-buffered x tile + output slab (lane-padded in VMEM) +
    # resident weights (double-buffered by default) + in-kernel intermediates.
    vmem_est = (2 * tile_b * D * 4
                + 2 * tile_b * LANE * 4
                + 4 * tile_b * LANE * 4
                + 2 * (D * LANE + LANE * LANE) * 2
                + 4 * LANE * 4
                + (4 << 20))
    vmem_limit = int(min(max(vmem_est, 32 << 20), 48 << 20))

    return pl.pallas_call(
        mlp_kernel,
        out_shape=jax.ShapeDtypeStruct((B, H2), jnp.float32),
        grid_spec=pltpu.PrefetchScalarGridSpec(
            num_scalar_prefetch=0,
            grid=grid,
            in_specs=[
                pl.BlockSpec((tile_b, D), lambda i: (i, 0)),    # x tile (pipelined)
                pl.BlockSpec((D, LANE), lambda i: (0, 0)),      # w1 (resident)
                pl.BlockSpec((1, LANE), lambda i: (0, 0)),      # b1
                pl.BlockSpec((LANE, H2), lambda i: (0, 0)),     # w2 (resident)
                pl.BlockSpec((1, H2), lambda i: (0, 0)),        # b2
            ],
            out_specs=pl.BlockSpec((tile_b, H2), lambda i: (i, 0)),  # real-width out
        ),
        compiler_params=pltpu.CompilerParams(
            dimension_semantics=("parallel",),   # batch tiles shard across TCs (v7x)
            vmem_limit_bytes=vmem_limit,
        ),
    )(x, w1p, b1p, w2p, b2p)


def init_params(key, input_dim):
    # Deterministic init mimicking torch.nn.Linear (uniform in +/- 1/sqrt(fan_in)).
    k1, k2, k3, k4 = jax.random.split(key, 4)
    bound1 = 1.0 / jnp.sqrt(float(input_dim))
    bound2 = 1.0 / jnp.sqrt(float(H1))
    w1 = jax.random.uniform(k1, (input_dim, H1), jnp.float32, -bound1, bound1)
    b1 = jax.random.uniform(k2, (1, H1), jnp.float32, -bound1, bound1)
    w2 = jax.random.uniform(k3, (H1, H2), jnp.float32, -bound2, bound2)
    b2 = jax.random.uniform(k4, (1, H2), jnp.float32, -bound2, bound2)
    return w1, b1, w2, b2


def _reference(x, w1, b1, w2, b2):
    x = x.astype(jnp.float32)
    h = jnp.maximum(x @ w1 + b1, 0.0)
    return jnp.maximum(h @ w2 + b2, 0.0)


if __name__ == "__main__":
    key = jax.random.PRNGKey(0)
    kx, kp, kx2 = jax.random.split(key, 3)

    # Small shape consistent with the module: (batch, input_dim).
    batch, input_dim = 8, 32
    x = jax.random.normal(kx, (batch, input_dim), jnp.float32)
    w1, b1, w2, b2 = init_params(kp, input_dim)
    padded = prepare_params(w1, b1, w2, b2)   # one-time weight pad / bf16 cast

    out = jax.block_until_ready(mlp_forward(x, *padded))
    ref = _reference(x, w1, b1, w2, b2)
    assert out.shape == (batch, H2)
    # bf16 MXU inputs with f32 accumulation -> relaxed tolerance vs f32 reference.
    assert jnp.allclose(out, ref, atol=2e-2, rtol=2e-2), "small-batch mismatch"

    # Second check: ragged (non-multiple-of-16) batch + multi-step pipelined grid,
    # forced via a small tile cap (batch2=300, tile_b=112 -> grid=(3,), ragged tail).
    batch2 = 300
    x2 = jax.random.normal(kx2, (batch2, input_dim), jnp.float32)
    out2 = jax.block_until_ready(mlp_forward(x2, *padded, max_tile_b=128))
    ref2 = _reference(x2, w1, b1, w2, b2)
    assert out2.shape == (batch2, H2)
    assert jnp.allclose(out2, ref2, atol=2e-2, rtol=2e-2), "tiled/ragged-batch mismatch"

    print("KERNEL_OK")
</pallas_src>

<mosaic_0001>
module attributes {stable_mosaic.version = 11 : i64} {
  func.func @mlp_kernel(%arg0: i32, %arg1: memref<16x32xf32, #tpu.memory_space<vmem>>, %arg2: memref<32x128xbf16, #tpu.memory_space<vmem>>, %arg3: memref<1x128xf32, #tpu.memory_space<vmem>>, %arg4: memref<128x20xbf16, #tpu.memory_space<vmem>>, %arg5: memref<1x20xf32, #tpu.memory_space<vmem>>, %arg6: memref<16x20xf32, #tpu.memory_space<vmem>>) attributes {dimension_semantics = [#tpu.dimension_semantics<parallel>], iteration_bounds = array<i64: 1>, scalar_prefetch = 0 : i64, scratch_operands = 0 : i64, tpu.core_type = #tpu.core_type<tc>, window_params = [{transform_indices = @transform_0, window_bounds = array<i64: 16, 32>}, {pipeline_mode = #tpu.pipeline_mode<synchronous>, transform_indices = @transform_1, window_bounds = array<i64: 32, 128>}, {pipeline_mode = #tpu.pipeline_mode<synchronous>, transform_indices = @transform_2, window_bounds = array<i64: 1, 128>}, {pipeline_mode = #tpu.pipeline_mode<synchronous>, transform_indices = @transform_3, window_bounds = array<i64: 128, 20>}, {pipeline_mode = #tpu.pipeline_mode<synchronous>, transform_indices = @transform_4, window_bounds = array<i64: 1, 20>}, {transform_indices = @transform_5, window_bounds = array<i64: 16, 20>}]} {
    %c0 = arith.constant 0 : index
    %c0_0 = arith.constant 0 : index
    %0 = vector.load %arg1[%c0, %c0_0] : memref<16x32xf32, #tpu.memory_space<vmem>>, vector<16x32xf32>
    %1 = arith.truncf %0 : vector<16x32xf32> to vector<16x32xbf16>
    %c0_1 = arith.constant 0 : index
    %c0_2 = arith.constant 0 : index
    %2 = vector.load %arg2[%c0_1, %c0_2] : memref<32x128xbf16, #tpu.memory_space<vmem>>, vector<32x128xbf16>
    %cst = arith.constant dense<0.000000e+00> : vector<16x128xf32>
    %3 = tpu.matmul %1, %2, %cst {dimension_numbers = #tpu.dot_dimension_numbers<[1], [0], [0], [1], [0, 0, 1, 1], [], []>} : vector<16x32xbf16>, vector<32x128xbf16>, vector<16x128xf32> -> vector<16x128xf32>
    %c0_3 = arith.constant 0 : index
    %c0_4 = arith.constant 0 : index
    %4 = vector.load %arg3[%c0_3, %c0_4] : memref<1x128xf32, #tpu.memory_space<vmem>>, vector<1x128xf32>
    %5 = vector.broadcast %4 : vector<1x128xf32> to vector<16x128xf32>
    %6 = arith.addf %3, %5 : vector<16x128xf32>
    %cst_5 = arith.constant 0.000000e+00 : f32
    %7 = vector.broadcast %cst_5 : f32 to vector<16x128xf32>
    %8 = arith.maximumf %6, %7 : vector<16x128xf32>
    %9 = arith.truncf %8 : vector<16x128xf32> to vector<16x128xbf16>
    %c0_6 = arith.constant 0 : index
    %c0_7 = arith.constant 0 : index
    %10 = vector.load %arg4[%c0_6, %c0_7] : memref<128x20xbf16, #tpu.memory_space<vmem>>, vector<128x20xbf16>
    %cst_8 = arith.constant dense<0.000000e+00> : vector<16x20xf32>
    %11 = tpu.matmul %9, %10, %cst_8 {dimension_numbers = #tpu.dot_dimension_numbers<[1], [0], [0], [1], [0, 0, 1, 1], [], []>} : vector<16x128xbf16>, vector<128x20xbf16>, vector<16x20xf32> -> vector<16x20xf32>
    %c0_9 = arith.constant 0 : index
    %c0_10 = arith.constant 0 : index
    %12 = vector.load %arg5[%c0_9, %c0_10] : memref<1x20xf32, #tpu.memory_space<vmem>>, vector<1x20xf32>
    %13 = vector.broadcast %12 : vector<1x20xf32> to vector<16x20xf32>
    %14 = arith.addf %11, %13 : vector<16x20xf32>
    %cst_11 = arith.constant 0.000000e+00 : f32
    %15 = vector.broadcast %cst_11 : f32 to vector<16x20xf32>
    %16 = arith.maximumf %14, %15 : vector<16x20xf32>
    %c0_12 = arith.constant 0 : index
    %c0_13 = arith.constant 0 : index
    %17 = vector.load %arg6[%c0_12, %c0_13] : memref<16x20xf32, #tpu.memory_space<vmem>>, vector<16x20xf32>
    tpu.vector_store %arg6[%c0_12, %c0_13], %16 {strides = array<i32>} : memref<16x20xf32, #tpu.memory_space<vmem>>, vector<16x20xf32>,
    return
  }
  func.func @transform_0(%arg0: i32) -> (i32, i32) {
    %c0_i32 = arith.constant 0 : i32
    %c0_i32_0 = arith.constant 0 : i32
    return %arg0, %c0_i32 : i32, i32
  }
  func.func @transform_1(%arg0: i32) -> (i32, i32) {
    %c0_i32 = arith.constant 0 : i32
    %c0_i32_0 = arith.constant 0 : i32
    %c0_i32_1 = arith.constant 0 : i32
    return %c0_i32, %c0_i32_0 : i32, i32
  }
  func.func @transform_2(%arg0: i32) -> (i32, i32) {
    %c0_i32 = arith.constant 0 : i32
    %c0_i32_0 = arith.constant 0 : i32
    %c0_i32_1 = arith.constant 0 : i32
    return %c0_i32, %c0_i32_0 : i32, i32
  }
  func.func @transform_3(%arg0: i32) -> (i32, i32) {
    %c0_i32 = arith.constant 0 : i32
    %c0_i32_0 = arith.constant 0 : i32
    %c0_i32_1 = arith.constant 0 : i32
    return %c0_i32, %c0_i32_0 : i32, i32
  }
  func.func @transform_4(%arg0: i32) -> (i32, i32) {
    %c0_i32 = arith.constant 0 : i32
    %c0_i32_0 = arith.constant 0 : i32
    %c0_i32_1 = arith.constant 0 : i32
    return %c0_i32, %c0_i32_0 : i32, i32
  }
  func.func @transform_5(%arg0: i32) -> (i32, i32) {
    %c0_i32 = arith.constant 0 : i32
    %c0_i32_0 = arith.constant 0 : i32
    return %arg0, %c0_i32 : i32, i32
  }
}

</mosaic_0001>

<llo_original>
// kernel: mlp_forward.1
$region0: #{mlp_forward.1}
  #allocation0 [shape = 'u32[]', space=smem, size = 0x4, offset = 0x4, fixed_abs, tag = 'smem constant byte address 0x4 - core index']
  #allocation1 [shape = 'u32[72,128]{1,0:T(1,128)}', space=vmem, size = 0x9000, scoped, tag = 'internal scratch']
  %s0 = inlined_call_operand.vmem [shape: f32[8,32], index: 0, kind: input, shape index: {}]
  %s1 = inlined_call_operand.vmem [shape: bf16[32,128], index: 1, kind: input, shape index: {}]
  %s2 = inlined_call_operand.vmem [shape: f32[1,128], index: 2, kind: input, shape index: {}]
  %s3 = inlined_call_operand.vmem [shape: bf16[128,20], index: 3, kind: input, shape index: {}]
  %s4 = inlined_call_operand.vmem [shape: f32[1,20], index: 4, kind: input, shape index: {}]
  %s5 = inlined_call_operand.hbm [shape: f32[8,20], index: 5, kind: output, shape index: {}]
  %s6 = sld [smem:[#allocation0]]
  $region30: #{mlp_forward.1} parent=0
    _
  %s8 = ssub.s32 1, %s6
  %s9 = scalar_select 0, %s8, %s6
  $region1: #{mlp_forward.1} parent=0
    #allocation2 [shape = 'u8[8192]{0}', space=vmem, size = 0x2000, scoped, tag = 'output window, operand 0, single buffered']
    #allocation3 [shape = 's32[1]{0}', space=sflag, size = 0x4, scoped, tag = 'scoped memory for mlp_forward.1']
    %10 = vsyncpa [#allocation3], 0
    // Predicated region
    $region2: #{mlp_forward.1} parent=1 // pred_check
      _
    $region3: #{mlp_forward.1} parent=1 // pred_check_branch
      %12 = sbr.rel (0) target = $region5
    $region4: #{mlp_forward.1} parent=1 // pred_region
      _
    $region5: #{mlp_forward.1} parent=1 // pred_fallthru
      _
    // Predicated region
    $region6: #{mlp_forward.1} parent=1 // pred_check
      _
    $region7: #{mlp_forward.1} parent=1 // pred_check_branch
      %14 = sbr.rel (0) target = $region9
    $region8: #{mlp_forward.1} parent=1 // pred_region
      _
    $region9: #{mlp_forward.1} parent=1 // pred_fallthru
      _
    // Predicated region
    $region10: #{mlp_forward.1} parent=1 // pred_check
      _
    $region11: #{mlp_forward.1} parent=1 // pred_check_branch
      %16 = sbr.rel (0) target = $region13
    $region12: #{mlp_forward.1} parent=1 // pred_region
      _
    $region13: #{mlp_forward.1} parent=1 // pred_fallthru
      _
    // Predicated region
    $region14: #{mlp_forward.1} parent=1 // pred_check
      _
    $region15: #{mlp_forward.1} parent=1 // pred_check_branch
      %18 = sbr.rel (0) target = $region17
    $region16: #{mlp_forward.1} parent=1 // pred_region
      _
    $region17: #{mlp_forward.1} parent=1 // pred_fallthru
      _
    // Predicated region
    $region18: #{mlp_forward.1} parent=1 // pred_check
      _
    $region19: #{mlp_forward.1} parent=1 // pred_check_branch
      %20 = sbr.rel (0) target = $region21
    $region20: #{mlp_forward.1} parent=1 // pred_region
      _
    $region21: #{mlp_forward.1} parent=1 // pred_fallthru
      _
    %v22 = vld [vmem:[%s0] sm:$0xff]
    %v23 = vld [vmem:[%s0 + $0x8] sm:$0xff]
    %v24 = vpack.c.bf16 %v23, %v22
    %v25 = vld [vmem:[%s1] sm:$0xf]
    %v26 = vld [vmem:[%s1 + $0x4] sm:$0xf]
    %v27 = vld [vmem:[%s1 + $0x8] sm:$0xf]
    %v28 = vld [vmem:[%s1 + $0xc] sm:$0xf]
    %v29 = vld [vmem:[%s2] sm:$0x1]
    %v31 = vperm.slane %v29, 0
    %v37 = vunpack.c.l.b16 %v25
    %v38 = vunpack.c.l.b16 %v26
    %v39 = vunpack.c.l.b16 %v27
    %v40 = vunpack.c.l.b16 %v28
    %v41 = vpack.c.b16 %v38, %v37
    %v42 = vpack.c.b16 %v40, %v39
    %vm45 = vcmask 261120
    %v47 = vsel %vm45, %v24, 0
    %49 = vmatpush.bf16.msra.mxu0 0
    %50 = vmatpush.bf16.msra.mxu0 0
    %51 = vmatpush.bf16.msra.mxu0 0
    %52 = vmatpush.bf16.msra.mxu0 0
    %53 = vmatpush.bf16.msra.mxu0 0
    %54 = vmatpush.bf16.msra.mxu0 0
    %55 = vmatpush.bf16.msra.mxu0 %v42
    %56 = vmatpush.bf16.msra.mxu0 %v41
    %57 = vmatmul.bf16.gmra.mxu0 %v47
    %v58 = vpop.f32.mrf.mxu0
    %v59 = vadd.f32 %v31, %v58
    %v60 = vpop.f32.mrf.mxu0
    %v61 = vadd.f32 %v31, %v60
    %62 = vdwg.mxu0
    %v63 = vmax.f32 %v59, 0.0
    %v64 = vmax.f32 %v61, 0.0
    %v65 = vpack.c.bf16 %v64, %v63
    %v66 = vld [vmem:[%s3] sm:$0xf]
    %v67 = vld [vmem:[%s3 + $0x4] sm:$0xf]
    %v68 = vld [vmem:[%s3 + $0x8] sm:$0xf]
    %v69 = vld [vmem:[%s3 + $0xc] sm:$0xf]
    %v70 = vld [vmem:[%s3 + $0x10] sm:$0xf]
    %v71 = vld [vmem:[%s3 + $0x14] sm:$0xf]
    %v72 = vld [vmem:[%s3 + $0x18] sm:$0xf]
    %v73 = vld [vmem:[%s3 + $0x1c] sm:$0xf]
    %v74 = vld [vmem:[%s3 + $0x20] sm:$0xf]
    %v75 = vld [vmem:[%s3 + $0x24] sm:$0xf]
    %v76 = vld [vmem:[%s3 + $0x28] sm:$0xf]
    %v77 = vld [vmem:[%s3 + $0x2c] sm:$0xf]
    %v78 = vld [vmem:[%s3 + $0x30] sm:$0xf]
    %v79 = vld [vmem:[%s3 + $0x34] sm:$0xf]
    %v80 = vld [vmem:[%s3 + $0x38] sm:$0xf]
    %v81 = vld [vmem:[%s3 + $0x3c] sm:$0xf]
    %v82 = vld [vmem:[%s4] sm:$0x1]
    %v84 = vperm.slane %v82, 0
    %v102 = vunpack.c.l.b16 %v66
    %v103 = vunpack.c.l.b16 %v67
    %v104 = vunpack.c.l.b16 %v68
    %v105 = vunpack.c.l.b16 %v69
    %v106 = vunpack.c.l.b16 %v70
    %v107 = vunpack.c.l.b16 %v71
    %v108 = vunpack.c.l.b16 %v72
    %v109 = vunpack.c.l.b16 %v73
    %v110 = vunpack.c.l.b16 %v74
    %v111 = vunpack.c.l.b16 %v75
    %v112 = vunpack.c.l.b16 %v76
    %v113 = vunpack.c.l.b16 %v77
    %v114 = vunpack.c.l.b16 %v78
    %v115 = vunpack.c.l.b16 %v79
    %v116 = vunpack.c.l.b16 %v80
    %v117 = vunpack.c.l.b16 %v81
    %v118 = vpack.c.b16 %v103, %v102
    %v119 = vpack.c.b16 %v105, %v104
    %v120 = vpack.c.b16 %v107, %v106
    %v121 = vpack.c.b16 %v109, %v108
    %v122 = vpack.c.b16 %v111, %v110
    %v123 = vpack.c.b16 %v113, %v112
    %v124 = vpack.c.b16 %v115, %v114
    %v125 = vpack.c.b16 %v117, %v116
    %134 = vmatpush.bf16.msra.mxu0 %v125
    %135 = vmatpush.bf16.msra.mxu0 %v124
    %136 = vmatpush.bf16.msra.mxu0 %v123
    %137 = vmatpush.bf16.msra.mxu0 %v122
    %138 = vmatpush.bf16.msra.mxu0 %v121
    %139 = vmatpush.bf16.msra.mxu0 %v120
    %140 = vmatpush.bf16.msra.mxu0 %v119
    %141 = vmatpush.bf16.msra.mxu0 %v118
    %142 = vmatmul.bf16.gmra.mxu0 %v65
    %v143 = vpop.f32.mrf.mxu0
    %v144 = vadd.f32 %v84, %v143
    %v145 = vpop.f32.mrf.mxu0
    %v146 = vadd.f32 %v84, %v145
    %147 = vdwg.mxu0
    %v148 = vmax.f32 %v144, 0.0
    %v149 = vmax.f32 %v146, 0.0
    %vm150 = vcmask 162816
    %151 = vst.msk [vmem:[#allocation2] sm:$0xff] %vm150, %v148
    %152 = vst.msk [vmem:[#allocation2 + $0x8] sm:$0xff] %vm150, %v149
    // Predicated region
    $region22: #{mlp_forward.1} parent=1 // pred_check
      _
    $region23: #{mlp_forward.1} parent=1 // pred_check_branch
      %154 = sbr.rel (0) target = $region25
    $region24: #{mlp_forward.1} parent=1 // pred_region
      %156 = vsyncadd [#allocation3], 128
      %s157 = sshll.u32 [#allocation2], 4
      %s158 = int_to_ptr.vmem [resolvable:$true] %s157
      %s159 = sshll.u32 %s5, 4
      %s160 = int_to_ptr.hbm [resolvable:$true] %s159
      %165 = dma.vmem_to_hbm [thread:$0]  %s158, 128, %s160, [#allocation3], 128, 128, 8
    $region25: #{mlp_forward.1} parent=1 // pred_fallthru
      _
    // Predicated region
    $region26: #{mlp_forward.1} parent=1 // pred_check
      _
    $region27: #{mlp_forward.1} parent=1 // pred_check_branch
      %167 = sbr.rel (0) target = $region29
    $region28: #{mlp_forward.1} parent=1 // pred_region
      %169 = dma.done [#allocation3], 256
    $region29: #{mlp_forward.1} parent=1 // pred_fallthru
      _
    %170 = vsyncpa [#allocation3], 1

</llo_original>
